<compile_context>
chip_gen: v6e
topology: v6e:2x2x1
jax: 0.10.0
libtpu: 0.0.40
codegen_flags: <defaults>
</compile_context>

<pallas_src>
import functools

import jax
import jax.numpy as jnp
import numpy as np
from jax.experimental import pallas as pl
from jax.experimental.pallas import tpu as pltpu


def _round_up(a, b):
    return -(-a // b) * b


def _amp_loss_kernel(xy_ref, m_ref, out_ref, *, tb, fp, n_lane_groups):
    # One fused DFT matmul per step: rows [0, tb) are x images, [tb, 2*tb) y.
    z = jnp.dot(xy_ref[...], m_ref[...],
                preferred_element_type=jnp.float32)           # (2*tb, 2*fp) = [Re | Im]

    # Per-128-lane-group magnitude + L1 fold: keeps live intermediates small
    # (never materializes full (tb, FP) mag/diff arrays).
    folded = None
    for g in range(n_lane_groups):
        lo = g * 128
        re = z[:, lo:lo + 128]                                # (2*tb, 128)
        im = z[:, fp + lo:fp + lo + 128]                      # (2*tb, 128)
        mag = jnp.sqrt(re * re + im * im)                     # (2*tb, 128)
        d = jnp.abs(mag[:tb, :] - mag[tb:, :])                # (tb, 128)
        folded = d if folded is None else folded + d

    # Fold rows into a lane-dense (8, 128) partial; no cross-lane reduce here.
    part = folded.reshape(-1, 8, 128).sum(axis=0)             # (8, 128)
    out_ref[...] = part.reshape(1, 8, 128)


def _fused_rfft2_operator(H, W, hw_pad):
    """Dense bf16 operator M with img.reshape(H*W) @ M = [Re(rfft2) | Im(rfft2)],
    each half zero-padded to FP = round_up(H*(W//2+1), 128) columns and the
    contraction axis zero-padded to hw_pad rows."""
    Wf = W // 2 + 1
    F = H * Wf
    FP = _round_up(F, 128)
    h = np.arange(H).reshape(H, 1, 1, 1)
    w = np.arange(W).reshape(1, W, 1, 1)
    kh = np.arange(H).reshape(1, 1, H, 1)
    kw = np.arange(Wf).reshape(1, 1, 1, Wf)
    ang = -2.0 * np.pi * (h * kh / H + w * kw / W)            # (H, W, H, Wf), float64
    m = np.zeros((hw_pad, 2 * FP), dtype=np.float32)
    m[:H * W, :F] = np.cos(ang).reshape(H * W, F)
    m[:H * W, FP:FP + F] = np.sin(ang).reshape(H * W, F)
    return jnp.asarray(m, dtype=jnp.bfloat16), FP


def amp_loss(x, y, *, block_images=512):
    """AMPLoss.forward: mean | |rfft2(x)| - |rfft2(y)| |  (norm='backward')."""
    B, C, H, W = x.shape
    Wf = W // 2 + 1
    BC = B * C
    HW = H * W
    hw_pad = _round_up(HW, 256)          # whole K-passes, unmasked input DMAs

    m, FP = _fused_rfft2_operator(H, W, hw_pad)
    m_bytes = hw_pad * (2 * FP) * 2      # bf16 operator, one copy

    # Generation-aware VMEM budget (v7x has only 64 MiB physical VMEM;
    # v5e/v6e have 128 MiB and can take a much larger scoped limit).
    try:
        vmem_cap = int(pltpu.get_tpu_info().vmem_capacity_bytes)
    except Exception:
        vmem_cap = 64 * 1024 * 1024      # assume the most restrictive (v7x)
    vmem_limit = int(min(vmem_cap * 3 // 4, 96 * 1024 * 1024))

    # Constant operand M: single-buffer it when it is big enough to matter
    # (its index_map is constant, so a second buffer is pure VMEM waste).
    m_spec = pl.BlockSpec((hw_pad, 2 * FP), lambda i: (0, 0))
    m_buffers = 2
    if m_bytes > (4 << 20):
        try:
            m_spec = pl.BlockSpec((hw_pad, 2 * FP), lambda i: (0, 0),
                                  pipeline_mode=pl.Buffered(1))
            m_buffers = 1
        except TypeError:                # BlockSpec without pipeline_mode support
            pass

    # Per-image VMEM cost: double-buffered packed bf16 rows (x + y), the f32
    # dot result, plus a generous allowance for per-group temporaries.
    per_row = 8 * hw_pad + 16 * FP + 6144
    budget = max(vmem_limit - m_buffers * m_bytes - (2 << 20), 8 * per_row)
    tb_vmem = max(8, (budget // per_row) // 8 * 8)

    bc8 = _round_up(BC, 8)
    # Batch tile: multiple of 8 sublanes, capped by user request, VMEM and batch.
    tb = max(8, (min(int(block_images), 512, tb_vmem, bc8) // 8) * 8)
    if bc8 >= 16:
        # Keep >= 2 grid steps: lets v7x shard the "parallel" axis across both
        # TensorCores and preserves DMA/compute overlap.
        tb = min(tb, _round_up(-(-bc8 // 2), 8))
    bc_pad = _round_up(BC, tb)
    nb = bc_pad // tb

    # bf16 input streams (halved HBM traffic).  Zero-pad batch and contraction
    # axes: padded images / pixels contribute exactly 0 to the L1 sum.
    xf = x.reshape(BC, HW).astype(jnp.bfloat16)
    yf = y.reshape(BC, HW).astype(jnp.bfloat16)
    if bc_pad != BC or hw_pad != HW:
        pad = ((0, bc_pad - BC), (0, hw_pad - HW))
        xf = jnp.pad(xf, pad)
        yf = jnp.pad(yf, pad)

    # Pack per-tile [x_tile; y_tile] so each grid step runs ONE fused matmul
    # (the DFT operator is pushed into the MXU once per step, not twice).
    xy = jnp.concatenate(
        [xf.reshape(nb, tb, hw_pad), yf.reshape(nb, tb, hw_pad)], axis=1
    ).reshape(nb * 2 * tb, hw_pad)

    kernel = functools.partial(_amp_loss_kernel, tb=tb, fp=FP,
                               n_lane_groups=FP // 128)

    partials = pl.pallas_call(
        kernel,
        out_shape=jax.ShapeDtypeStruct((nb, 8, 128), jnp.float32),
        grid_spec=pltpu.PrefetchScalarGridSpec(
            num_scalar_prefetch=0,
            grid=(nb,),
            in_specs=[
                pl.BlockSpec((2 * tb, hw_pad), lambda i: (i, 0)),
                m_spec,                     # constant block index -> no re-DMA
            ],
            out_specs=pl.BlockSpec((1, 8, 128), lambda i: (i, 0, 0)),
        ),
        compiler_params=pltpu.CompilerParams(
            dimension_semantics=("parallel",),   # disjoint output block per step
            vmem_limit_bytes=vmem_limit,
        ),
    )(xy, m)

    # Tiny final reduction + L1 mean over the true (unpadded) element count.
    return jnp.sum(partials) / (BC * H * Wf)


def _reference(x, y):
    xm = jnp.abs(jnp.fft.rfft2(x, norm="backward"))
    ym = jnp.abs(jnp.fft.rfft2(y, norm="backward"))
    return jnp.mean(jnp.abs(xm - ym))


if __name__ == "__main__":
    key = jax.random.PRNGKey(0)
    kx, ky = jax.random.split(key)
    B, C, H, W = 2, 4, 16, 16
    x = jax.random.normal(kx, (B, C, H, W), dtype=jnp.float32)
    y = jax.random.normal(ky, (B, C, H, W), dtype=jnp.float32)

    out = jax.block_until_ready(amp_loss(x, y))
    ref = jax.block_until_ready(_reference(x, y))
    np.testing.assert_allclose(np.asarray(out), np.asarray(ref), rtol=1e-2, atol=1e-2)

    print("KERNEL_OK")
</pallas_src>

<mosaic_0001>
module attributes {stable_mosaic.version = 11 : i64} {
  func.func @_amp_loss_kernel(%arg0: i32, %arg1: memref<16x256xbf16, #tpu.memory_space<vmem>>, %arg2: memref<256x512xbf16, #tpu.memory_space<vmem>>, %arg3: memref<1x8x128xf32, #tpu.memory_space<vmem>>) attributes {dimension_semantics = [#tpu.dimension_semantics<parallel>], iteration_bounds = array<i64: 1>, scalar_prefetch = 0 : i64, scratch_operands = 0 : i64, tpu.core_type = #tpu.core_type<tc>, window_params = [{transform_indices = @transform_0, window_bounds = array<i64: 16, 256>}, {pipeline_mode = #tpu.pipeline_mode<synchronous>, transform_indices = @transform_1, window_bounds = array<i64: 256, 512>}, {transform_indices = @transform_2, window_bounds = array<i64: 1, 8, 128>}]} {
    %c0 = arith.constant 0 : index
    %c0_0 = arith.constant 0 : index
    %0 = vector.load %arg1[%c0, %c0_0] : memref<16x256xbf16, #tpu.memory_space<vmem>>, vector<16x256xbf16>
    %c0_1 = arith.constant 0 : index
    %c0_2 = arith.constant 0 : index
    %1 = vector.load %arg2[%c0_1, %c0_2] : memref<256x512xbf16, #tpu.memory_space<vmem>>, vector<256x512xbf16>
    %cst = arith.constant dense<0.000000e+00> : vector<16x512xf32>
    %2 = tpu.matmul %0, %1, %cst {dimension_numbers = #tpu.dot_dimension_numbers<[1], [0], [0], [1], [0, 0, 1, 1], [], []>} : vector<16x256xbf16>, vector<256x512xbf16>, vector<16x512xf32> -> vector<16x512xf32>
    %3 = vector.extract_strided_slice %2 {offsets = [0, 0], sizes = [16, 128], strides = [1, 1]} : vector<16x512xf32> to vector<16x128xf32>
    %4 = vector.extract_strided_slice %2 {offsets = [0, 256], sizes = [16, 128], strides = [1, 1]} : vector<16x512xf32> to vector<16x128xf32>
    %5 = arith.mulf %3, %3 : vector<16x128xf32>
    %6 = arith.mulf %4, %4 : vector<16x128xf32>
    %7 = arith.addf %5, %6 : vector<16x128xf32>
    %8 = math.sqrt %7 : vector<16x128xf32>
    %9 = vector.extract_strided_slice %8 {offsets = [0, 0], sizes = [8, 128], strides = [1, 1]} : vector<16x128xf32> to vector<8x128xf32>
    %10 = vector.extract_strided_slice %8 {offsets = [8, 0], sizes = [8, 128], strides = [1, 1]} : vector<16x128xf32> to vector<8x128xf32>
    %11 = arith.subf %9, %10 : vector<8x128xf32>
    %12 = math.absf %11 : vector<8x128xf32>
    %13 = vector.extract_strided_slice %2 {offsets = [0, 128], sizes = [16, 128], strides = [1, 1]} : vector<16x512xf32> to vector<16x128xf32>
    %14 = vector.extract_strided_slice %2 {offsets = [0, 384], sizes = [16, 128], strides = [1, 1]} : vector<16x512xf32> to vector<16x128xf32>
    %15 = arith.mulf %13, %13 : vector<16x128xf32>
    %16 = arith.mulf %14, %14 : vector<16x128xf32>
    %17 = arith.addf %15, %16 : vector<16x128xf32>
    %18 = math.sqrt %17 : vector<16x128xf32>
    %19 = vector.extract_strided_slice %18 {offsets = [0, 0], sizes = [8, 128], strides = [1, 1]} : vector<16x128xf32> to vector<8x128xf32>
    %20 = vector.extract_strided_slice %18 {offsets = [8, 0], sizes = [8, 128], strides = [1, 1]} : vector<16x128xf32> to vector<8x128xf32>
    %21 = arith.subf %19, %20 : vector<8x128xf32>
    %22 = math.absf %21 : vector<8x128xf32>
    %23 = arith.addf %12, %22 : vector<8x128xf32>
    %24 = vector.shape_cast %23 : vector<8x128xf32> to vector<1x8x128xf32>
    %cst_3 = arith.constant dense<0.000000e+00> : vector<8x128xf32>
    %25 = vector.multi_reduction <add>, %24, %cst_3 [0] : vector<1x8x128xf32> to vector<8x128xf32>
    %26 = vector.shape_cast %25 : vector<8x128xf32> to vector<1x8x128xf32>
    %c0_4 = arith.constant 0 : index
    %c0_5 = arith.constant 0 : index
    %c0_6 = arith.constant 0 : index
    %27 = vector.load %arg3[%c0_4, %c0_5, %c0_6] : memref<1x8x128xf32, #tpu.memory_space<vmem>>, vector<1x8x128xf32>
    tpu.vector_store %arg3[%c0_4, %c0_5, %c0_6], %26 {strides = array<i32>} : memref<1x8x128xf32, #tpu.memory_space<vmem>>, vector<1x8x128xf32>,
    return
  }
  func.func @transform_0(%arg0: i32) -> (i32, i32) {
    %c0_i32 = arith.constant 0 : i32
    %c0_i32_0 = arith.constant 0 : i32
    return %arg0, %c0_i32 : i32, i32
  }
  func.func @transform_1(%arg0: i32) -> (i32, i32) {
    %c0_i32 = arith.constant 0 : i32
    %c0_i32_0 = arith.constant 0 : i32
    %c0_i32_1 = arith.constant 0 : i32
    return %c0_i32, %c0_i32_0 : i32, i32
  }
  func.func @transform_2(%arg0: i32) -> (i32, i32, i32) {
    %c0_i32 = arith.constant 0 : i32
    %c0_i32_0 = arith.constant 0 : i32
    %c0_i32_1 = arith.constant 0 : i32
    return %arg0, %c0_i32, %c0_i32_0 : i32, i32, i32
  }
}

</mosaic_0001>

<llo_original>
// kernel: tpu_custom_call.1
$region0: #{tpu_custom_call.1}
  #allocation0 [shape = 'u32[]', space=smem, size = 0x4, offset = 0x4, fixed_abs, tag = 'smem constant byte address 0x4 - core index']
  #allocation1 [shape = 'u32[144,128]{1,0:T(1,128)}', space=vmem, size = 0x12000, scoped, tag = 'internal scratch']
  %s0 = inlined_call_operand.hbm [shape: bf16[16,256], index: 0, kind: input, shape index: {}]
  %s1 = inlined_call_operand.hbm [shape: bf16[256,512], index: 1, kind: input, shape index: {}]
  %s2 = inlined_call_operand.hbm [shape: f32[1,8,128], index: 2, kind: output, shape index: {}]
  %s3 = sld [smem:[#allocation0]]
  $region26: #{tpu_custom_call.1} parent=0
    _
  %s5 = ssub.s32 1, %s3
  %s6 = scalar_select 0, %s5, %s3
  $region1: #{tpu_custom_call.1} parent=0
    #allocation2 [shape = 'u8[8192]{0}', space=vmem, size = 0x2000, scoped, tag = 'input window, operand 0, single buffered']
    #allocation3 [shape = 's32[1]{0}', space=sflag, size = 0x4, scoped, tag = 'scoped memory for tpu_custom_call.1']
    #allocation4 [shape = 's32[1]{0}', space=sflag, size = 0x4, scoped, tag = 'scoped memory for tpu_custom_call.1']
    #allocation5 [shape = 'u8[262144]{0}', space=vmem, size = 0x40000, scoped, tag = 'input window, operand 1, single buffered']
    #allocation6 [shape = 's32[1]{0}', space=sflag, size = 0x4, scoped, tag = 'scoped memory for tpu_custom_call.1']
    #allocation7 [shape = 'u8[4096]{0}', space=vmem, size = 0x1000, scoped, tag = 'output window, operand 0, single buffered']
    %7 = vsyncpa [#allocation3], 0
    %8 = vsyncpa [#allocation6], 0
    %9 = vsyncpa [#allocation4], 0
    // Predicated region
    $region2: #{tpu_custom_call.1} parent=1 // pred_check
      _
    $region3: #{tpu_custom_call.1} parent=1 // pred_check_branch
      %11 = sbr.rel (0) target = $region5
    $region4: #{tpu_custom_call.1} parent=1 // pred_region
      %s13 = ssub.s32 256, 256
      %14 = vsyncadd [#allocation3], %s13
      %s15 = sshll.u32 [#allocation2], 4
      %s16 = int_to_ptr.vmem [resolvable:$true] %s15
      %21 = dma.hbm_to_vmem [thread:$0]  %s0, 256, %s16, [#allocation3], 128, 128, 8
    $region5: #{tpu_custom_call.1} parent=1 // pred_fallthru
      _
    // Predicated region
    $region6: #{tpu_custom_call.1} parent=1 // pred_check
      _
    $region7: #{tpu_custom_call.1} parent=1 // pred_check_branch
      %23 = sbr.rel (0) target = $region9
    $region8: #{tpu_custom_call.1} parent=1 // pred_region
      %s25 = ssub.s32 8192, 8192
      %26 = vsyncadd [#allocation6], %s25
      %s27 = sshll.u32 [#allocation5], 4
      %s28 = int_to_ptr.vmem [resolvable:$true] %s27
      %33 = dma.hbm_to_vmem [thread:$0]  %s1, 8192, %s28, [#allocation6], 256, 256, 16
    $region9: #{tpu_custom_call.1} parent=1 // pred_fallthru
      _
    // Predicated region
    $region10: #{tpu_custom_call.1} parent=1 // pred_check
      _
    $region11: #{tpu_custom_call.1} parent=1 // pred_check_branch
      %35 = sbr.rel (0) target = $region13
    $region12: #{tpu_custom_call.1} parent=1 // pred_region
      %36 = dma.done [#allocation3], 256
    $region13: #{tpu_custom_call.1} parent=1 // pred_fallthru
      _
    // Predicated region
    $region14: #{tpu_custom_call.1} parent=1 // pred_check
      _
    $region15: #{tpu_custom_call.1} parent=1 // pred_check_branch
      %38 = sbr.rel (0) target = $region17
    $region16: #{tpu_custom_call.1} parent=1 // pred_region
      %39 = dma.done [#allocation6], 8192
    $region17: #{tpu_custom_call.1} parent=1 // pred_fallthru
      _
    %v40 = vld [vmem:[#allocation2] sm:$0xff]
    %v41 = vld [vmem:[#allocation2 + $0x8] sm:$0xff]
    %v42 = vld [vmem:[#allocation5] sm:$0xff]
    %v43 = vld [vmem:[#allocation5 + $0x8] sm:$0xff]
    %v44 = vld [vmem:[#allocation5 + $0x10] sm:$0xff]
    %v45 = vld [vmem:[#allocation5 + $0x18] sm:$0xff]
    %v46 = vld [vmem:[#allocation5 + $0x20] sm:$0xff]
    %v47 = vld [vmem:[#allocation5 + $0x28] sm:$0xff]
    %v48 = vld [vmem:[#allocation5 + $0x30] sm:$0xff]
    %v49 = vld [vmem:[#allocation5 + $0x38] sm:$0xff]
    %v50 = vld [vmem:[#allocation5 + $0x40] sm:$0xff]
    %v51 = vld [vmem:[#allocation5 + $0x48] sm:$0xff]
    %v52 = vld [vmem:[#allocation5 + $0x50] sm:$0xff]
    %v53 = vld [vmem:[#allocation5 + $0x58] sm:$0xff]
    %v54 = vld [vmem:[#allocation5 + $0x60] sm:$0xff]
    %v55 = vld [vmem:[#allocation5 + $0x68] sm:$0xff]
    %v56 = vld [vmem:[#allocation5 + $0x70] sm:$0xff]
    %v57 = vld [vmem:[#allocation5 + $0x78] sm:$0xff]
    %v58 = vld [vmem:[#allocation5 + $0x80] sm:$0xff]
    %v59 = vld [vmem:[#allocation5 + $0x88] sm:$0xff]
    %v60 = vld [vmem:[#allocation5 + $0x90] sm:$0xff]
    %v61 = vld [vmem:[#allocation5 + $0x98] sm:$0xff]
    %v62 = vld [vmem:[#allocation5 + $0xa0] sm:$0xff]
    %v63 = vld [vmem:[#allocation5 + $0xa8] sm:$0xff]
    %v64 = vld [vmem:[#allocation5 + $0xb0] sm:$0xff]
    %v65 = vld [vmem:[#allocation5 + $0xb8] sm:$0xff]
    %v66 = vld [vmem:[#allocation5 + $0xc0] sm:$0xff]
    %v67 = vld [vmem:[#allocation5 + $0xc8] sm:$0xff]
    %v68 = vld [vmem:[#allocation5 + $0xd0] sm:$0xff]
    %v69 = vld [vmem:[#allocation5 + $0xd8] sm:$0xff]
    %v70 = vld [vmem:[#allocation5 + $0xe0] sm:$0xff]
    %v71 = vld [vmem:[#allocation5 + $0xe8] sm:$0xff]
    %v72 = vld [vmem:[#allocation5 + $0xf0] sm:$0xff]
    %v73 = vld [vmem:[#allocation5 + $0xf8] sm:$0xff]
    %v74 = vld [vmem:[#allocation5 + $0x100] sm:$0xff]
    %v75 = vld [vmem:[#allocation5 + $0x108] sm:$0xff]
    %v76 = vld [vmem:[#allocation5 + $0x110] sm:$0xff]
    %v77 = vld [vmem:[#allocation5 + $0x118] sm:$0xff]
    %v78 = vld [vmem:[#allocation5 + $0x120] sm:$0xff]
    %v79 = vld [vmem:[#allocation5 + $0x128] sm:$0xff]
    %v80 = vld [vmem:[#allocation5 + $0x130] sm:$0xff]
    %v81 = vld [vmem:[#allocation5 + $0x138] sm:$0xff]
    %v82 = vld [vmem:[#allocation5 + $0x140] sm:$0xff]
    %v83 = vld [vmem:[#allocation5 + $0x148] sm:$0xff]
    %v84 = vld [vmem:[#allocation5 + $0x150] sm:$0xff]
    %v85 = vld [vmem:[#allocation5 + $0x158] sm:$0xff]
    %v86 = vld [vmem:[#allocation5 + $0x160] sm:$0xff]
    %v87 = vld [vmem:[#allocation5 + $0x168] sm:$0xff]
    %v88 = vld [vmem:[#allocation5 + $0x170] sm:$0xff]
    %v89 = vld [vmem:[#allocation5 + $0x178] sm:$0xff]
    %v90 = vld [vmem:[#allocation5 + $0x180] sm:$0xff]
    %v91 = vld [vmem:[#allocation5 + $0x188] sm:$0xff]
    %v92 = vld [vmem:[#allocation5 + $0x190] sm:$0xff]
    %v93 = vld [vmem:[#allocation5 + $0x198] sm:$0xff]
    %v94 = vld [vmem:[#allocation5 + $0x1a0] sm:$0xff]
    %v95 = vld [vmem:[#allocation5 + $0x1a8] sm:$0xff]
    %v96 = vld [vmem:[#allocation5 + $0x1b0] sm:$0xff]
    %v97 = vld [vmem:[#allocation5 + $0x1b8] sm:$0xff]
    %v98 = vld [vmem:[#allocation5 + $0x1c0] sm:$0xff]
    %v99 = vld [vmem:[#allocation5 + $0x1c8] sm:$0xff]
    %v100 = vld [vmem:[#allocation5 + $0x1d0] sm:$0xff]
    %v101 = vld [vmem:[#allocation5 + $0x1d8] sm:$0xff]
    %v102 = vld [vmem:[#allocation5 + $0x1e0] sm:$0xff]
    %v103 = vld [vmem:[#allocation5 + $0x1e8] sm:$0xff]
    %v104 = vld [vmem:[#allocation5 + $0x1f0] sm:$0xff]
    %v105 = vld [vmem:[#allocation5 + $0x1f8] sm:$0xff]
    %v108 = vunpack.c.l.b16 %v40
    %v109 = vunpack.c.h.b16 %v40
    %v110 = vunpack.c.l.b16 %v41
    %v111 = vunpack.c.h.b16 %v41
    %v112 = vpack.c.b16 %v110, %v108
    %v113 = vpack.c.b16 %v111, %v109
    %v180 = vunpack.c.l.b16 %v42
    %v181 = vunpack.c.h.b16 %v42
    %v182 = vunpack.c.l.b16 %v43
    %v183 = vunpack.c.h.b16 %v43
    %v184 = vunpack.c.l.b16 %v44
    %v185 = vunpack.c.h.b16 %v44
    %v186 = vunpack.c.l.b16 %v45
    %v187 = vunpack.c.h.b16 %v45
    %v188 = vunpack.c.l.b16 %v46
    %v189 = vunpack.c.h.b16 %v46
    %v190 = vunpack.c.l.b16 %v47
    %v191 = vunpack.c.h.b16 %v47
    %v192 = vunpack.c.l.b16 %v48
    %v193 = vunpack.c.h.b16 %v48
    %v194 = vunpack.c.l.b16 %v49
    %v195 = vunpack.c.h.b16 %v49
    %v196 = vunpack.c.l.b16 %v50
    %v197 = vunpack.c.h.b16 %v50
    %v198 = vunpack.c.l.b16 %v51
    %v199 = vunpack.c.h.b16 %v51
    %v200 = vunpack.c.l.b16 %v52
    %v201 = vunpack.c.h.b16 %v52
    %v202 = vunpack.c.l.b16 %v53
    %v203 = vunpack.c.h.b16 %v53
    %v204 = vunpack.c.l.b16 %v54
    %v205 = vunpack.c.h.b16 %v54
    %v206 = vunpack.c.l.b16 %v55
    %v207 = vunpack.c.h.b16 %v55
    %v208 = vunpack.c.l.b16 %v56
    %v209 = vunpack.c.h.b16 %v56
    %v210 = vunpack.c.l.b16 %v57
    %v211 = vunpack.c.h.b16 %v57
    %v212 = vunpack.c.l.b16 %v58
    %v213 = vunpack.c.h.b16 %v58
    %v214 = vunpack.c.l.b16 %v59
    %v215 = vunpack.c.h.b16 %v59
    %v216 = vunpack.c.l.b16 %v60
    %v217 = vunpack.c.h.b16 %v60
    %v218 = vunpack.c.l.b16 %v61
    %v219 = vunpack.c.h.b16 %v61
    %v220 = vunpack.c.l.b16 %v62
    %v221 = vunpack.c.h.b16 %v62
    %v222 = vunpack.c.l.b16 %v63
    %v223 = vunpack.c.h.b16 %v63
    %v224 = vunpack.c.l.b16 %v64
    %v225 = vunpack.c.h.b16 %v64
    %v226 = vunpack.c.l.b16 %v65
    %v227 = vunpack.c.h.b16 %v65
    %v228 = vunpack.c.l.b16 %v66
    %v229 = vunpack.c.h.b16 %v66
    %v230 = vunpack.c.l.b16 %v67
    %v231 = vunpack.c.h.b16 %v67
    %v232 = vunpack.c.l.b16 %v68
    %v233 = vunpack.c.h.b16 %v68
    %v234 = vunpack.c.l.b16 %v69
    %v235 = vunpack.c.h.b16 %v69
    %v236 = vunpack.c.l.b16 %v70
    %v237 = vunpack.c.h.b16 %v70
    %v238 = vunpack.c.l.b16 %v71
    %v239 = vunpack.c.h.b16 %v71
    %v240 = vunpack.c.l.b16 %v72
    %v241 = vunpack.c.h.b16 %v72
    %v242 = vunpack.c.l.b16 %v73
    %v243 = vunpack.c.h.b16 %v73
    %v244 = vunpack.c.l.b16 %v74
    %v245 = vunpack.c.h.b16 %v74
    %v246 = vunpack.c.l.b16 %v75
    %v247 = vunpack.c.h.b16 %v75
    %v248 = vunpack.c.l.b16 %v76
    %v249 = vunpack.c.h.b16 %v76
    %v250 = vunpack.c.l.b16 %v77
    %v251 = vunpack.c.h.b16 %v77
    %v252 = vunpack.c.l.b16 %v78
    %v253 = vunpack.c.h.b16 %v78
    %v254 = vunpack.c.l.b16 %v79
    %v255 = vunpack.c.h.b16 %v79
    %v256 = vunpack.c.l.b16 %v80
    %v257 = vunpack.c.h.b16 %v80
    %v258 = vunpack.c.l.b16 %v81
    %v259 = vunpack.c.h.b16 %v81
    %v260 = vunpack.c.l.b16 %v82
    %v261 = vunpack.c.h.b16 %v82
    %v262 = vunpack.c.l.b16 %v83
    %v263 = vunpack.c.h.b16 %v83
    %v264 = vunpack.c.l.b16 %v84
    %v265 = vunpack.c.h.b16 %v84
    %v266 = vunpack.c.l.b16 %v85
    %v267 = vunpack.c.h.b16 %v85
    %v268 = vunpack.c.l.b16 %v86
    %v269 = vunpack.c.h.b16 %v86
    %v270 = vunpack.c.l.b16 %v87
    %v271 = vunpack.c.h.b16 %v87
    %v272 = vunpack.c.l.b16 %v88
    %v273 = vunpack.c.h.b16 %v88
    %v274 = vunpack.c.l.b16 %v89
    %v275 = vunpack.c.h.b16 %v89
    %v276 = vunpack.c.l.b16 %v90
    %v277 = vunpack.c.h.b16 %v90
    %v278 = vunpack.c.l.b16 %v91
    %v279 = vunpack.c.h.b16 %v91
    %v280 = vunpack.c.l.b16 %v92
    %v281 = vunpack.c.h.b16 %v92
    %v282 = vunpack.c.l.b16 %v93
    %v283 = vunpack.c.h.b16 %v93
    %v284 = vunpack.c.l.b16 %v94
    %v285 = vunpack.c.h.b16 %v94
    %v286 = vunpack.c.l.b16 %v95
    %v287 = vunpack.c.h.b16 %v95
    %v288 = vunpack.c.l.b16 %v96
    %v289 = vunpack.c.h.b16 %v96
    %v290 = vunpack.c.l.b16 %v97
    %v291 = vunpack.c.h.b16 %v97
    %v292 = vunpack.c.l.b16 %v98
    %v293 = vunpack.c.h.b16 %v98
    %v294 = vunpack.c.l.b16 %v99
    %v295 = vunpack.c.h.b16 %v99
    %v296 = vunpack.c.l.b16 %v100
    %v297 = vunpack.c.h.b16 %v100
    %v298 = vunpack.c.l.b16 %v101
    %v299 = vunpack.c.h.b16 %v101
    %v300 = vunpack.c.l.b16 %v102
    %v301 = vunpack.c.h.b16 %v102
    %v302 = vunpack.c.l.b16 %v103
    %v303 = vunpack.c.h.b16 %v103
    %v304 = vunpack.c.l.b16 %v104
    %v305 = vunpack.c.h.b16 %v104
    %v306 = vunpack.c.l.b16 %v105
    %v307 = vunpack.c.h.b16 %v105
    %v308 = vpack.c.b16 %v184, %v180
    %v309 = vpack.c.b16 %v185, %v181
    %v310 = vpack.c.b16 %v186, %v182
    %v311 = vpack.c.b16 %v187, %v183
    %v312 = vpack.c.b16 %v192, %v188
    %v313 = vpack.c.b16 %v193, %v189
    %v314 = vpack.c.b16 %v194, %v190
    %v315 = vpack.c.b16 %v195, %v191
    %v316 = vpack.c.b16 %v200, %v196
    %v317 = vpack.c.b16 %v201, %v197
    %v318 = vpack.c.b16 %v202, %v198
    %v319 = vpack.c.b16 %v203, %v199
    %v320 = vpack.c.b16 %v208, %v204
    %v321 = vpack.c.b16 %v209, %v205
    %v322 = vpack.c.b16 %v210, %v206
    %v323 = vpack.c.b16 %v211, %v207
    %v324 = vpack.c.b16 %v216, %v212
    %v325 = vpack.c.b16 %v217, %v213
    %v326 = vpack.c.b16 %v218, %v214
    %v327 = vpack.c.b16 %v219, %v215
    %v328 = vpack.c.b16 %v224, %v220
    %v329 = vpack.c.b16 %v225, %v221
    %v330 = vpack.c.b16 %v226, %v222
    %v331 = vpack.c.b16 %v227, %v223
    %v332 = vpack.c.b16 %v232, %v228
    %v333 = vpack.c.b16 %v233, %v229
    %v334 = vpack.c.b16 %v234, %v230
    %v335 = vpack.c.b16 %v235, %v231
    %v336 = vpack.c.b16 %v240, %v236
    %v337 = vpack.c.b16 %v241, %v237
    %v338 = vpack.c.b16 %v242, %v238
    %v339 = vpack.c.b16 %v243, %v239
    %v340 = vpack.c.b16 %v248, %v244
    %v341 = vpack.c.b16 %v249, %v245
    %v342 = vpack.c.b16 %v250, %v246
    %v343 = vpack.c.b16 %v251, %v247
    %v344 = vpack.c.b16 %v256, %v252
    %v345 = vpack.c.b16 %v257, %v253
    %v346 = vpack.c.b16 %v258, %v254
    %v347 = vpack.c.b16 %v259, %v255
    %v348 = vpack.c.b16 %v264, %v260
    %v349 = vpack.c.b16 %v265, %v261
    %v350 = vpack.c.b16 %v266, %v262
    %v351 = vpack.c.b16 %v267, %v263
    %v352 = vpack.c.b16 %v272, %v268
    %v353 = vpack.c.b16 %v273, %v269
    %v354 = vpack.c.b16 %v274, %v270
    %v355 = vpack.c.b16 %v275, %v271
    %v356 = vpack.c.b16 %v280, %v276
    %v357 = vpack.c.b16 %v281, %v277
    %v358 = vpack.c.b16 %v282, %v278
    %v359 = vpack.c.b16 %v283, %v279
    %v360 = vpack.c.b16 %v288, %v284
    %v361 = vpack.c.b16 %v289, %v285
    %v362 = vpack.c.b16 %v290, %v286
    %v363 = vpack.c.b16 %v291, %v287
    %v364 = vpack.c.b16 %v296, %v292
    %v365 = vpack.c.b16 %v297, %v293
    %v366 = vpack.c.b16 %v298, %v294
    %v367 = vpack.c.b16 %v299, %v295
    %v368 = vpack.c.b16 %v304, %v300
    %v369 = vpack.c.b16 %v305, %v301
    %v370 = vpack.c.b16 %v306, %v302
    %v371 = vpack.c.b16 %v307, %v303
    %436 = vmatprep.subr.bf16.mxu0 %v337
    %437 = vmatpush1.bf16.msra.mxu0 %v336
    %438 = vmatprep.subr.bf16.mxu0 %v333
    %439 = vmatpush1.bf16.msra.mxu0 %v332
    %440 = vmatprep.subr.bf16.mxu0 %v329
    %441 = vmatpush1.bf16.msra.mxu0 %v328
    %442 = vmatprep.subr.bf16.mxu0 %v325
    %443 = vmatpush1.bf16.msra.mxu0 %v324
    %444 = vmatprep.subr.bf16.mxu0 %v321
    %445 = vmatpush1.bf16.msra.mxu0 %v320
    %446 = vmatprep.subr.bf16.mxu0 %v317
    %447 = vmatpush1.bf16.msra.mxu0 %v316
    %448 = vmatprep.subr.bf16.mxu0 %v313
    %449 = vmatpush1.bf16.msra.mxu0 %v312
    %450 = vmatprep.subr.bf16.mxu0 %v309
    %451 = vmatpush1.bf16.msra.mxu0 %v308
    %452 = vmatprep.subr.bf16.mxu0 %v369
    %453 = vmatpush2.bf16.msra.mxu0 %v368
    %454 = vmatprep.subr.bf16.mxu0 %v365
    %455 = vmatpush2.bf16.msra.mxu0 %v364
    %456 = vmatprep.subr.bf16.mxu0 %v361
    %457 = vmatpush2.bf16.msra.mxu0 %v360
    %458 = vmatprep.subr.bf16.mxu0 %v357
    %459 = vmatpush2.bf16.msra.mxu0 %v356
    %460 = vmatprep.subr.bf16.mxu0 %v353
    %461 = vmatpush2.bf16.msra.mxu0 %v352
    %462 = vmatprep.subr.bf16.mxu0 %v349
    %463 = vmatpush2.bf16.msra.mxu0 %v348
    %464 = vmatprep.subr.bf16.mxu0 %v345
    %465 = vmatpush2.bf16.msra.mxu0 %v344
    %466 = vmatprep.subr.bf16.mxu0 %v341
    %467 = vmatpush2.bf16.msra.mxu0 %v340
    %468 = vmatprep.mubr.bf16.mxu0 %v113
    %469 = vmatmul.mubr.bf16.gmra.mxu0 %v112
    %v470 = vpop.f32.mrf.mxu0
    %v471 = vadd.f32 0.0, %v470
    %v472 = vpop.f32.mrf.mxu0
    %v473 = vadd.f32 0.0, %v472
    %v474 = vpop.f32.mrf.mxu0
    %v475 = vadd.f32 0.0, %v474
    %v476 = vpop.f32.mrf.mxu0
    %v477 = vadd.f32 0.0, %v476
    %478 = vdwg.mxu0
    %479 = vmatprep.subr.bf16.mxu0 %v339
    %480 = vmatpush1.bf16.msra.mxu0 %v338
    %481 = vmatprep.subr.bf16.mxu0 %v335
    %482 = vmatpush1.bf16.msra.mxu0 %v334
    %483 = vmatprep.subr.bf16.mxu0 %v331
    %484 = vmatpush1.bf16.msra.mxu0 %v330
    %485 = vmatprep.subr.bf16.mxu0 %v327
    %486 = vmatpush1.bf16.msra.mxu0 %v326
    %487 = vmatprep.subr.bf16.mxu0 %v323
    %488 = vmatpush1.bf16.msra.mxu0 %v322
    %489 = vmatprep.subr.bf16.mxu0 %v319
    %490 = vmatpush1.bf16.msra.mxu0 %v318
    %491 = vmatprep.subr.bf16.mxu0 %v315
    %492 = vmatpush1.bf16.msra.mxu0 %v314
    %493 = vmatprep.subr.bf16.mxu0 %v311
    %494 = vmatpush1.bf16.msra.mxu0 %v310
    %495 = vmatprep.subr.bf16.mxu0 %v371
    %496 = vmatpush2.bf16.msra.mxu0 %v370
    %497 = vmatprep.subr.bf16.mxu0 %v367
    %498 = vmatpush2.bf16.msra.mxu0 %v366
    %499 = vmatprep.subr.bf16.mxu0 %v363
    %500 = vmatpush2.bf16.msra.mxu0 %v362
    %501 = vmatprep.subr.bf16.mxu0 %v359
    %502 = vmatpush2.bf16.msra.mxu0 %v358
    %503 = vmatprep.subr.bf16.mxu0 %v355
    %504 = vmatpush2.bf16.msra.mxu0 %v354
    %505 = vmatprep.subr.bf16.mxu0 %v351
    %506 = vmatpush2.bf16.msra.mxu0 %v350
    %507 = vmatprep.subr.bf16.mxu0 %v347
    %508 = vmatpush2.bf16.msra.mxu0 %v346
    %509 = vmatprep.subr.bf16.mxu0 %v343
    %510 = vmatpush2.bf16.msra.mxu0 %v342
    %511 = vmatprep.mubr.bf16.mxu0 %v113
    %512 = vmatmul.mubr.bf16.gmra.mxu0 %v112
    %v513 = vpop.f32.mrf.mxu0
    %v514 = vadd.f32 0.0, %v513
    %v515 = vpop.f32.mrf.mxu0
    %v516 = vadd.f32 0.0, %v515
    %v517 = vpop.f32.mrf.mxu0
    %v518 = vadd.f32 0.0, %v517
    %v519 = vpop.f32.mrf.mxu0
    %v520 = vadd.f32 0.0, %v519
    %521 = vdwg.mxu0
    %v522 = vmul.f32 %v471, %v471
    %v523 = vmul.f32 %v475, %v475
    %v524 = vmul.f32 %v514, %v514
    %v525 = vmul.f32 %v518, %v518
    %v526 = vadd.f32 %v522, %v524
    %v527 = vadd.f32 %v523, %v525
    %v528 = vrsqrt.pop %v526
    %v529 = vmul.f32 %v526, %v528
    %vm530 = vcmp.eq.f32.partialorder %v526, inf
    %v531 = vsel %vm530, %v526, %v529
    %vm532 = vcmp.eq.f32.partialorder %v526, 0.0
    %v533 = vand.u32 %v526, 2147483648
    %v534 = vsel %vm532, %v533, %v531
    %v535 = vrsqrt.pop %v527
    %v536 = vmul.f32 %v527, %v535
    %vm537 = vcmp.eq.f32.partialorder %v527, inf
    %v538 = vsel %vm537, %v527, %v536
    %vm539 = vcmp.eq.f32.partialorder %v527, 0.0
    %v540 = vand.u32 %v527, 2147483648
    %v541 = vsel %vm539, %v540, %v538
    %v542 = vsub.f32 %v534, %v541
    %v543 = vand.u32 2147483647, %v542
    %v544 = vmul.f32 %v473, %v473
    %v545 = vmul.f32 %v477, %v477
    %v546 = vmul.f32 %v516, %v516
    %v547 = vmul.f32 %v520, %v520
    %v548 = vadd.f32 %v544, %v546
    %v549 = vadd.f32 %v545, %v547
    %v550 = vrsqrt.pop %v548
    %v551 = vmul.f32 %v548, %v550
    %vm552 = vcmp.eq.f32.partialorder %v548, inf
    %v553 = vsel %vm552, %v548, %v551
    %vm554 = vcmp.eq.f32.partialorder %v548, 0.0
    %v555 = vand.u32 %v548, 2147483648
    %v556 = vsel %vm554, %v555, %v553
    %v557 = vrsqrt.pop %v549
    %v558 = vmul.f32 %v549, %v557
    %vm559 = vcmp.eq.f32.partialorder %v549, inf
    %v560 = vsel %vm559, %v549, %v558
    %vm561 = vcmp.eq.f32.partialorder %v549, 0.0
    %v562 = vand.u32 %v549, 2147483648
    %v563 = vsel %vm561, %v562, %v560
    %v564 = vsub.f32 %v556, %v563
    %v565 = vand.u32 2147483647, %v564
    %v566 = vadd.f32 %v543, %v565
    %v567 = vadd.f32 %v566, 0.0
    %568 = vst [vmem:[#allocation7] sm:$0xff] %v567
    // Predicated region
    $region18: #{tpu_custom_call.1} parent=1 // pred_check
      _
    $region19: #{tpu_custom_call.1} parent=1 // pred_check_branch
      %570 = sbr.rel (0) target = $region21
    $region20: #{tpu_custom_call.1} parent=1 // pred_region
      %s572 = ssub.s32 128, 128
      %573 = vsyncadd [#allocation4], %s572
      %s575 = sshll.u32 [#allocation7], 4
      %s576 = int_to_ptr.vmem [resolvable:$true] %s575
      %578 = dma.vmem_to_hbm [thread:$0]  %s576, 128, %s2, [#allocation4]
    $region21: #{tpu_custom_call.1} parent=1 // pred_fallthru
      _
    // Predicated region
    $region22: #{tpu_custom_call.1} parent=1 // pred_check
      _
    $region23: #{tpu_custom_call.1} parent=1 // pred_check_branch
      %580 = sbr.rel (0) target = $region25
    $region24: #{tpu_custom_call.1} parent=1 // pred_region
      %581 = dma.done [#allocation4], 128
    $region25: #{tpu_custom_call.1} parent=1 // pred_fallthru
      _
    %582 = vsyncpa [#allocation3], 1
    %583 = vsyncpa [#allocation6], 1
    %584 = vsyncpa [#allocation4], 1

</llo_original>
